<compile_context>
chip_gen: v5e
topology: v5e:2x2
jax: 0.10.0
libtpu: 0.0.40
codegen_flags: <defaults>
</compile_context>

<pallas_src>
import functools

import jax
import jax.numpy as jnp
from jax import lax
from jax.experimental import pallas as pl
from jax.experimental.pallas import tpu as pltpu


def _round_up(x, m):
    return ((x + m - 1) // m) * m


def _choose_reduction_tile(k_dim, target=512):
    """Largest multiple of 128 <= target that divides k_dim; else the full k_dim."""
    if k_dim <= target:
        return k_dim
    t = (target // 128) * 128
    while t >= 128:
        if k_dim % t == 0:
            return t
        t -= 128
    return k_dim


def prepare_lora_b_stacked(lora_b_stacked):
    """One-time (adapter-load-time) transform: [max_loras,1,N,R] -> [max_loras,1,R,N]."""
    return jnp.swapaxes(lora_b_stacked, 2, 3)


def _row_parallel_lora_kernel(idx_ref, x_ref, w_ref, a_ref, bt_ref, bias_ref,
                              o_ref, acc_ref, shrink_ref):
    # idx_ref:    (1,) SMEM      scalar-prefetched LoRA adapter index (used in index_maps)
    # x_ref:      (tm, tk)       token x reduction tile
    # w_ref:      (tn, tk)       base-weight tile, native (N, K) layout
    # a_ref:      (R, tk)        LoRA-A tile of the selected adapter
    # bt_ref:     (R, tn)        pre-transposed LoRA-B tile of the selected adapter
    # bias_ref:   (1, tn)        bias tile (lane-dense 2-D)
    # o_ref:      (tm, tn)       output tile
    # acc_ref:    (tm, tn) f32   base-matmul accumulator, carried across the k axis
    # shrink_ref: (tm, R)  f32   LoRA shrink accumulator, carried across the k axis
    del idx_ref
    k = pl.program_id(2)

    @pl.when(k == 0)
    def _():
        acc_ref[...] = jnp.zeros_like(acc_ref)
        shrink_ref[...] = jnp.zeros_like(shrink_ref)

    x = x_ref[...]
    contract_last = (((1,), (1,)), ((), ()))   # contract last dims of both operands

    # Base row-parallel linear: x @ W.T (transposed-RHS contraction; no XLU transpose,
    # no wrapper-side weight copy).
    acc_ref[...] += lax.dot_general(
        x, w_ref[...].astype(x.dtype),
        dimension_numbers=contract_last,
        preferred_element_type=jnp.float32)

    # LoRA shrink: x @ A.T, accumulated across the K split.
    shrink_ref[...] += lax.dot_general(
        x, a_ref[...].astype(x.dtype),
        dimension_numbers=contract_last,
        preferred_element_type=jnp.float32)

    @pl.when(k == pl.num_programs(2) - 1)
    def _():
        # LoRA expand: (x @ A.T) @ B.T, scale = 1.0.  The shrink is downcast to the LoRA
        # weight dtype first (matches the rank-R intermediate dtype of the reference impl).
        lora = jnp.dot(shrink_ref[...].astype(bt_ref.dtype), bt_ref[...],
                       preferred_element_type=jnp.float32)
        out = acc_ref[...] + lora + bias_ref[...].astype(jnp.float32)
        o_ref[...] = out.astype(o_ref.dtype)


@functools.partial(jax.jit,
                   static_argnames=("tm", "tn", "tk", "vmem_limit_bytes"))
def row_parallel_linear_with_lora(x, weight, bias, lora_a_stacked,
                                  lora_b_stacked_t, lora_index,
                                  *, tm=None, tn=None, tk=None,
                                  vmem_limit_bytes=None):
    """Forward of RowParallelLinearWithLoRA (tp_size=1, input_is_parallel).

    `lora_b_stacked_t` is the adapter-load-time pre-transposed LoRA-B with shape
    [max_loras, 1, rank, output_size] (see prepare_lora_b_stacked).

    Returns (output, output_bias), matching the PyTorch module
    (skip_bias_add == False -> output_bias is None).
    """
    T, K = x.shape
    N, Kw = weight.shape
    assert Kw == K
    ml, one, R, Ka = lora_a_stacked.shape
    assert one == 1 and Ka == K
    assert lora_b_stacked_t.shape == (ml, 1, R, N)

    if bias is None:
        bias = jnp.zeros((N,), dtype=x.dtype)

    # --- tile selection --------------------------------------------------------
    # dtype-aware sublane packing: 8 rows (f32), 16 (bf16), 32 (int8/fp8)
    pack = 8 * max(1, 4 // jnp.dtype(x.dtype).itemsize)
    if tm is None:
        tm = 512 if T >= 512 else (256 if T >= 256 else 128)
    tm = min(tm, _round_up(T, pack))
    if tn is None:
        tn = 256
    tn = min(tn, _round_up(N, 128))
    if tk is None:
        tk = _choose_reduction_tile(K, target=512)
    assert K % tk == 0, "reduction tile must divide input_size"

    grid = (pl.cdiv(T, tm), pl.cdiv(N, tn), K // tk)

    # --- VMEM budget: double-buffered tiles + accumulators, capped at 48 MiB ----
    if vmem_limit_bytes is None:
        in_bytes = max(jnp.dtype(a.dtype).itemsize
                       for a in (x, weight, lora_a_stacked, lora_b_stacked_t))
        out_bytes = jnp.dtype(x.dtype).itemsize
        lane_r = max(R, 128)                      # R lanes pad to 128 in VMEM
        est = (2 * (tm * tk + tn * tk + R * tk + lane_r * tn + tn) * in_bytes
               + 2 * tm * tn * out_bytes
               + tm * tn * 4 + tm * lane_r * 4)
        vmem_limit_bytes = min(48 * 1024 * 1024,
                               max(16 * 1024 * 1024, int(1.5 * est) + (4 << 20)))

    idx = jnp.asarray(lora_index, dtype=jnp.int32).reshape(1)
    bias2d = bias.reshape(1, N)

    out = pl.pallas_call(
        _row_parallel_lora_kernel,
        out_shape=jax.ShapeDtypeStruct((T, N), x.dtype),
        grid_spec=pltpu.PrefetchScalarGridSpec(
            num_scalar_prefetch=1,           # lora_index -> SMEM, used in index_maps
            grid=grid,
            in_specs=[
                pl.BlockSpec((tm, tk), lambda i, j, k, idx_ref: (i, k)),       # x
                pl.BlockSpec((tn, tk), lambda i, j, k, idx_ref: (j, k)),       # W (N, K)
                pl.BlockSpec((None, None, R, tk),                              # LoRA A
                             lambda i, j, k, idx_ref: (idx_ref[0], 0, 0, k)),
                pl.BlockSpec((None, None, R, tn),                              # LoRA B^T
                             lambda i, j, k, idx_ref: (idx_ref[0], 0, 0, j)),
                pl.BlockSpec((1, tn), lambda i, j, k, idx_ref: (0, j)),        # bias
            ],
            out_specs=pl.BlockSpec((tm, tn), lambda i, j, k, idx_ref: (i, j)),
            scratch_shapes=[pltpu.VMEM((tm, tn), jnp.float32),   # base accumulator
                            pltpu.VMEM((tm, R), jnp.float32)],   # shrink accumulator
        ),
        compiler_params=pltpu.CompilerParams(
            # token axis and output-feature axis both parallel (megacore on v7x);
            # the K-reduction axis carries the accumulators and must be "arbitrary".
            dimension_semantics=("parallel", "parallel", "arbitrary"),
            vmem_limit_bytes=vmem_limit_bytes),
    )(idx, x, weight, lora_a_stacked, lora_b_stacked_t, bias2d)

    output_bias = None   # skip_bias_add == False
    return out, output_bias


# ------------------------------ reference & tests ------------------------------

def _reference(x, weight, bias, lora_a_stacked, lora_b_stacked, lora_index):
    x = x.astype(jnp.float32)
    w = weight.astype(jnp.float32)
    b = bias.astype(jnp.float32)
    a = lora_a_stacked[lora_index, 0].astype(jnp.float32)
    bb = lora_b_stacked[lora_index, 0].astype(jnp.float32)
    return x @ w.T + b[None, :] + (x @ a.T) @ bb.T


def _make_inputs(key, T, K, N, max_loras, R, dtype):
    k1, k2, k3, k4, k5 = jax.random.split(key, 5)
    x = jax.random.normal(k1, (T, K), dtype=jnp.float32).astype(dtype)
    weight = (jax.random.normal(k2, (N, K), dtype=jnp.float32) * 0.05).astype(dtype)
    bias = (jax.random.normal(k3, (N,), dtype=jnp.float32) * 0.1).astype(dtype)
    lora_a = (jax.random.normal(k4, (max_loras, 1, R, K), dtype=jnp.float32)
              * 0.05).astype(dtype)
    lora_b = (jax.random.normal(k5, (max_loras, 1, N, R), dtype=jnp.float32)
              * 0.05).astype(dtype)
    return x, weight, bias, lora_a, lora_b


if __name__ == "__main__":
    key = jax.random.PRNGKey(0)
    k_a, k_b, k_c = jax.random.split(key, 3)

    # --- Test 1: f32, tile-aligned shapes, forced K-split (tk=128 -> 2 k-steps) ---
    x, w, b, la, lb = _make_inputs(k_a, T=16, K=256, N=256, max_loras=2, R=8,
                                   dtype=jnp.float32)
    lbt = prepare_lora_b_stacked(lb)      # one-time adapter-load transform
    out, out_bias = row_parallel_linear_with_lora(x, w, b, la, lbt, 1, tk=128)
    out = jax.block_until_ready(out)
    ref = _reference(x, w, b, la, lb, 1)
    assert out.shape == (16, 256)
    assert out_bias is None
    assert jnp.allclose(out, ref, atol=2e-3, rtol=2e-3), "mismatch (f32 aligned)"

    # --- Test 2: f32, ragged T / N (uneven edge blocks, no padding path) ----------
    x, w, b, la, lb = _make_inputs(k_b, T=13, K=384, N=200, max_loras=2, R=8,
                                   dtype=jnp.float32)
    lbt = prepare_lora_b_stacked(lb)
    out, _ = row_parallel_linear_with_lora(x, w, b, la, lbt, 0)
    out = jax.block_until_ready(out)
    ref = _reference(x, w, b, la, lb, 0)
    assert out.shape == (13, 200)
    assert jnp.allclose(out, ref, atol=2e-3, rtol=2e-3), "mismatch (f32 ragged)"

    # --- Test 3: bf16 weights/activations, f32 accumulation, K-split --------------
    x, w, b, la, lb = _make_inputs(k_c, T=32, K=256, N=256, max_loras=2, R=8,
                                   dtype=jnp.bfloat16)
    lbt = prepare_lora_b_stacked(lb)
    out, _ = row_parallel_linear_with_lora(x, w, b, la, lbt, 1, tk=128)
    out = jax.block_until_ready(out)
    ref = _reference(x, w, b, la, lb, 1)
    assert out.shape == (32, 256)
    assert bool(jnp.all(jnp.isfinite(out.astype(jnp.float32))))
    assert jnp.allclose(out.astype(jnp.float32), ref, atol=1e-1, rtol=1e-1), \
        "mismatch (bf16)"

    print("KERNEL_OK")
</pallas_src>

<mosaic_0001>
module attributes {stable_mosaic.version = 11 : i64} {
  func.func @_row_parallel_lora_kernel(%arg0: i32, %arg1: i32, %arg2: i32, %arg3: memref<1xi32, #tpu.memory_space<smem>>, %arg4: memref<16x128xf32, #tpu.memory_space<vmem>>, %arg5: memref<256x128xf32, #tpu.memory_space<vmem>>, %arg6: memref<1x1x8x128xf32, #tpu.memory_space<vmem>>, %arg7: memref<1x1x8x256xf32, #tpu.memory_space<vmem>>, %arg8: memref<1x256xf32, #tpu.memory_space<vmem>>, %arg9: memref<16x256xf32, #tpu.memory_space<vmem>>, %arg10: memref<16x256xf32, #tpu.memory_space<vmem>>, %arg11: memref<16x8xf32, #tpu.memory_space<vmem>>) attributes {dimension_semantics = [#tpu.dimension_semantics<parallel>, #tpu.dimension_semantics<parallel>, #tpu.dimension_semantics<arbitrary>], iteration_bounds = array<i64: 1, 1, 2>, scalar_prefetch = 1 : i64, scratch_operands = 2 : i64, tpu.core_type = #tpu.core_type<tc>, window_params = [{transform_indices = @transform_0, window_bounds = array<i64: 16, 128>}, {transform_indices = @transform_1, window_bounds = array<i64: 256, 128>}, {transform_indices = @transform_2, window_bounds = array<i64: 1, 1, 8, 128>}, {transform_indices = @transform_3, window_bounds = array<i64: 1, 1, 8, 256>}, {transform_indices = @transform_4, window_bounds = array<i64: 1, 256>}, {transform_indices = @transform_5, window_bounds = array<i64: 16, 256>}]} {
    %c0_i32 = arith.constant 0 : i32
    %0 = arith.cmpi eq, %arg2, %c0_i32 : i32
    %1 = arith.extui %0 : i1 to i32
    %c0_i32_0 = arith.constant 0 : i32
    %2 = arith.cmpi ne, %1, %c0_i32_0 : i32
    scf.if %2 {
      %cst_18 = arith.constant 0.000000e+00 : f32
      %18 = vector.broadcast %cst_18 : f32 to vector<16x256xf32>
      %c0_19 = arith.constant 0 : index
      %c0_20 = arith.constant 0 : index
      %19 = vector.load %arg10[%c0_19, %c0_20] : memref<16x256xf32, #tpu.memory_space<vmem>>, vector<16x256xf32>
      tpu.vector_store %arg10[%c0_19, %c0_20], %18 {strides = array<i32>} : memref<16x256xf32, #tpu.memory_space<vmem>>, vector<16x256xf32>,
      %cst_21 = arith.constant 0.000000e+00 : f32
      %20 = vector.broadcast %cst_21 : f32 to vector<16x8xf32>
      %c0_22 = arith.constant 0 : index
      %c0_23 = arith.constant 0 : index
      %21 = vector.load %arg11[%c0_22, %c0_23] : memref<16x8xf32, #tpu.memory_space<vmem>>, vector<16x8xf32>
      tpu.vector_store %arg11[%c0_22, %c0_23], %20 {strides = array<i32>} : memref<16x8xf32, #tpu.memory_space<vmem>>, vector<16x8xf32>,
    } else {
    }
    %c0 = arith.constant 0 : index
    %c0_1 = arith.constant 0 : index
    %3 = vector.load %arg4[%c0, %c0_1] : memref<16x128xf32, #tpu.memory_space<vmem>>, vector<16x128xf32>
    %c0_2 = arith.constant 0 : index
    %c0_3 = arith.constant 0 : index
    %4 = vector.load %arg10[%c0_2, %c0_3] : memref<16x256xf32, #tpu.memory_space<vmem>>, vector<16x256xf32>
    %c0_4 = arith.constant 0 : index
    %c0_5 = arith.constant 0 : index
    %5 = vector.load %arg5[%c0_4, %c0_5] : memref<256x128xf32, #tpu.memory_space<vmem>>, vector<256x128xf32>
    %cst = arith.constant dense<0.000000e+00> : vector<16x256xf32>
    %6 = tpu.matmul %3, %5, %cst {dimension_numbers = #tpu.dot_dimension_numbers<[1], [1], [0], [0], [0, 0, 1, 0], [], []>} : vector<16x128xf32>, vector<256x128xf32>, vector<16x256xf32> -> vector<16x256xf32>
    %7 = arith.addf %4, %6 : vector<16x256xf32>
    %c0_6 = arith.constant 0 : index
    %c0_7 = arith.constant 0 : index
    %8 = vector.load %arg10[%c0_6, %c0_7] : memref<16x256xf32, #tpu.memory_space<vmem>>, vector<16x256xf32>
    tpu.vector_store %arg10[%c0_6, %c0_7], %7 {strides = array<i32>} : memref<16x256xf32, #tpu.memory_space<vmem>>, vector<16x256xf32>,
    %c0_8 = arith.constant 0 : index
    %c0_9 = arith.constant 0 : index
    %9 = vector.load %arg11[%c0_8, %c0_9] : memref<16x8xf32, #tpu.memory_space<vmem>>, vector<16x8xf32>
    %c0_10 = arith.constant 0 : index
    %c0_11 = arith.constant 0 : index
    %c0_12 = arith.constant 0 : index
    %c0_13 = arith.constant 0 : index
    %10 = vector.load %arg6[%c0_10, %c0_11, %c0_12, %c0_13] : memref<1x1x8x128xf32, #tpu.memory_space<vmem>>, vector<1x1x8x128xf32>
    %11 = vector.shape_cast %10 : vector<1x1x8x128xf32> to vector<8x128xf32>
    %cst_14 = arith.constant dense<0.000000e+00> : vector<16x8xf32>
    %12 = tpu.matmul %3, %11, %cst_14 {dimension_numbers = #tpu.dot_dimension_numbers<[1], [1], [0], [0], [0, 0, 1, 0], [], []>} : vector<16x128xf32>, vector<8x128xf32>, vector<16x8xf32> -> vector<16x8xf32>
    %13 = arith.addf %9, %12 : vector<16x8xf32>
    %c0_15 = arith.constant 0 : index
    %c0_16 = arith.constant 0 : index
    %14 = vector.load %arg11[%c0_15, %c0_16] : memref<16x8xf32, #tpu.memory_space<vmem>>, vector<16x8xf32>
    tpu.vector_store %arg11[%c0_15, %c0_16], %13 {strides = array<i32>} : memref<16x8xf32, #tpu.memory_space<vmem>>, vector<16x8xf32>,
    %c1_i32 = arith.constant 1 : i32
    %15 = arith.cmpi eq, %arg2, %c1_i32 : i32
    %16 = arith.extui %15 : i1 to i32
    %c0_i32_17 = arith.constant 0 : i32
    %17 = arith.cmpi ne, %16, %c0_i32_17 : i32
    scf.if %17 {
      %c0_18 = arith.constant 0 : index
      %c0_19 = arith.constant 0 : index
      %18 = vector.load %arg11[%c0_18, %c0_19] : memref<16x8xf32, #tpu.memory_space<vmem>>, vector<16x8xf32>
      %c0_20 = arith.constant 0 : index
      %c0_21 = arith.constant 0 : index
      %c0_22 = arith.constant 0 : index
      %c0_23 = arith.constant 0 : index
      %19 = vector.load %arg7[%c0_20, %c0_21, %c0_22, %c0_23] : memref<1x1x8x256xf32, #tpu.memory_space<vmem>>, vector<1x1x8x256xf32>
      %20 = vector.shape_cast %19 : vector<1x1x8x256xf32> to vector<8x256xf32>
      %cst_24 = arith.constant dense<0.000000e+00> : vector<16x256xf32>
      %21 = tpu.matmul %18, %20, %cst_24 {dimension_numbers = #tpu.dot_dimension_numbers<[1], [0], [0], [1], [0, 0, 1, 1], [], []>} : vector<16x8xf32>, vector<8x256xf32>, vector<16x256xf32> -> vector<16x256xf32>
      %c0_25 = arith.constant 0 : index
      %c0_26 = arith.constant 0 : index
      %22 = vector.load %arg10[%c0_25, %c0_26] : memref<16x256xf32, #tpu.memory_space<vmem>>, vector<16x256xf32>
      %23 = arith.addf %22, %21 : vector<16x256xf32>
      %c0_27 = arith.constant 0 : index
      %c0_28 = arith.constant 0 : index
      %24 = vector.load %arg8[%c0_27, %c0_28] : memref<1x256xf32, #tpu.memory_space<vmem>>, vector<1x256xf32>
      %25 = vector.broadcast %24 : vector<1x256xf32> to vector<16x256xf32>
      %26 = arith.addf %23, %25 : vector<16x256xf32>
      %c0_29 = arith.constant 0 : index
      %c0_30 = arith.constant 0 : index
      %27 = vector.load %arg9[%c0_29, %c0_30] : memref<16x256xf32, #tpu.memory_space<vmem>>, vector<16x256xf32>
      tpu.vector_store %arg9[%c0_29, %c0_30], %26 {strides = array<i32>} : memref<16x256xf32, #tpu.memory_space<vmem>>, vector<16x256xf32>,
    } else {
    }
    return
  }
  func.func @transform_0(%arg0: i32, %arg1: i32, %arg2: i32, %arg3: memref<1xi32, #tpu.memory_space<smem>>) -> (i32, i32) {
    %c0_i32 = arith.constant 0 : i32
    return %arg0, %arg2 : i32, i32
  }
  func.func @transform_1(%arg0: i32, %arg1: i32, %arg2: i32, %arg3: memref<1xi32, #tpu.memory_space<smem>>) -> (i32, i32) {
    %c0_i32 = arith.constant 0 : i32
    return %arg1, %arg2 : i32, i32
  }
  func.func @transform_2(%arg0: i32, %arg1: i32, %arg2: i32, %arg3: memref<1xi32, #tpu.memory_space<smem>>) -> (i32, i32, i32, i32) {
    %c0 = arith.constant 0 : index
    %0 = memref.load %arg3[%c0] : memref<1xi32, #tpu.memory_space<smem>>
    %c0_i32 = arith.constant 0 : i32
    %c0_i32_0 = arith.constant 0 : i32
    %c0_i32_1 = arith.constant 0 : i32
    return %0, %c0_i32, %c0_i32_0, %arg2 : i32, i32, i32, i32
  }
  func.func @transform_3(%arg0: i32, %arg1: i32, %arg2: i32, %arg3: memref<1xi32, #tpu.memory_space<smem>>) -> (i32, i32, i32, i32) {
    %c0 = arith.constant 0 : index
    %0 = memref.load %arg3[%c0] : memref<1xi32, #tpu.memory_space<smem>>
    %c0_i32 = arith.constant 0 : i32
    %c0_i32_0 = arith.constant 0 : i32
    %c0_i32_1 = arith.constant 0 : i32
    return %0, %c0_i32, %c0_i32_0, %arg1 : i32, i32, i32, i32
  }
  func.func @transform_4(%arg0: i32, %arg1: i32, %arg2: i32, %arg3: memref<1xi32, #tpu.memory_space<smem>>) -> (i32, i32) {
    %c0_i32 = arith.constant 0 : i32
    %c0_i32_0 = arith.constant 0 : i32
    return %c0_i32, %arg1 : i32, i32
  }
  func.func @transform_5(%arg0: i32, %arg1: i32, %arg2: i32, %arg3: memref<1xi32, #tpu.memory_space<smem>>) -> (i32, i32) {
    %c0_i32 = arith.constant 0 : i32
    return %arg0, %arg1 : i32, i32
  }
}

</mosaic_0001>

<llo_original>
// kernel: row_parallel_linear_with_lora.1
$region0: #{row_parallel_linear_with_lora.1}
  #allocation0 [shape = 'u32[]', space=smem, size = 0x4, offset = 0x4, fixed_abs, tag = 'smem constant byte address 0x4 - core index']
  #allocation1 [shape = 'u32[72,128]{1,0:T(1,128)}', space=vmem, size = 0x9000, scoped, tag = 'internal scratch']
  #allocation2 [shape = 'f32[16,256]{1,0:T(8,128)}', space=vmem, size = 0x4000, scoped, tag = 'scratch operand']
  #allocation3 [shape = 'f32[16,8]{1,0:T(8,128)}', space=vmem, size = 0x2000, scoped, tag = 'scratch operand']
  #allocation4 [shape = 's32[1]{0}', space=sflag, size = 0x4, scoped, tag = 'scoped memory for row_parallel_linear_with_lora.1']
  #allocation5 [shape = 's32[1]{0:T(128)S(6)}', space=smem, size = 0x200, scoped, tag = 'prefetched SMEM operand 0']
  %s0 = inlined_call_operand.<no memory space> [shape: s32[1], index: 0, kind: input, shape index: {}]
  %s1 = inlined_call_operand.hbm [shape: f32[16,256], index: 1, kind: input, shape index: {}]
  %s2 = inlined_call_operand.hbm [shape: f32[256,256], index: 2, kind: input, shape index: {}]
  %s3 = inlined_call_operand.hbm [shape: f32[2,1,8,256], index: 3, kind: input, shape index: {}]
  %s4 = inlined_call_operand.hbm [shape: f32[2,1,8,256], index: 4, kind: input, shape index: {}]
  %s5 = inlined_call_operand.vmem [shape: f32[1,256], index: 5, kind: input, shape index: {}]
  %s6 = inlined_call_operand.hbm [shape: f32[16,256], index: 6, kind: output, shape index: {}]
  %s7 = sld [smem:[#allocation0]]
  $region77: #{row_parallel_linear_with_lora.1} parent=0
    _
  %s9 = ssub.s32 1, %s7
  %s10 = scalar_select 0, %s9, %s7
  %11 = sst [smem:[#allocation5]] %s0
  $region1: #{row_parallel_linear_with_lora.1} parent=0
    #allocation6 [shape = 'u8[16384]{0}', space=vmem, size = 0x4000, scoped, tag = 'input window, operand 1']
    #allocation7 [shape = 's32[2]{0}', space=sflag, size = 0x8, scoped, tag = 'scoped memory for row_parallel_linear_with_lora.1']
    #allocation8 [shape = 's32[2]{0}', space=sflag, size = 0x8, scoped, tag = 'scoped memory for row_parallel_linear_with_lora.1']
    #allocation9 [shape = 'u8[262144]{0}', space=vmem, size = 0x40000, scoped, tag = 'input window, operand 2']
    #allocation10 [shape = 's32[2]{0}', space=sflag, size = 0x8, scoped, tag = 'scoped memory for row_parallel_linear_with_lora.1']
    #allocation11 [shape = 'u8[8192]{0}', space=vmem, size = 0x2000, scoped, tag = 'input window, operand 3']
    #allocation12 [shape = 'u8[8192]{0}', space=vmem, size = 0x2000, scoped, tag = 'input window, operand 4, single buffered']
    #allocation13 [shape = 's32[1]{0}', space=sflag, size = 0x4, scoped, tag = 'scoped memory for row_parallel_linear_with_lora.1']
    #allocation14 [shape = 'u8[16384]{0}', space=vmem, size = 0x4000, scoped, tag = 'output window, operand 0, single buffered']
    %12 = vsyncpa [#allocation7], 0
    %s13 = scalar_lea.sflag [#allocation7], 1
    %14 = vsyncpa %s13, 0
    %15 = vsyncpa [#allocation10], 0
    %s16 = scalar_lea.sflag [#allocation10], 1
    %17 = vsyncpa %s16, 0
    %18 = vsyncpa [#allocation13], 0
    %19 = vsyncpa [#allocation8], 0
    loop: start=0, step=1, limit=4
    $region2: #{row_parallel_linear_with_lora.1} parent=1 // loop_pre_header
      _
    $region3: #{row_parallel_linear_with_lora.1} parent=1 // loop_header
      %s21 = sphi 0, %s25
      %p22 = scmp.ge.s32.totalorder %s21, 4
      %s28 = sphi 0, %s47
      %s29 = sphi 0, %s43
      %s30 = sphi 0, %s39
      %s31 = sphi 0, %s28
      %s32 = sphi 0, %s29
      %s33 = sphi 0, %s30
      %s34 = sphi 0, %s31
      %s35 = sphi 0, %s32
      %s36 = sphi 0, %s33
      %s52 = sphi 0, %s54
      %s55 = sphi 0, %s52
      %s56 = sphi 0, %s55
      %s72 = sphi 0, %s56
      %s80 = sphi 0, %s82
      %s83 = sphi 0, %s80
      %s84 = sphi 0, %s83
      %s100 = sphi 0, %s84
      %s110 = sphi 0, %s112
      %s113 = sphi 0, %s110
      %s114 = sphi 0, %s113
      %s130 = sphi 0, %s114
      %s140 = sphi 0, %s142
      %s143 = sphi 0, %s140
      %s144 = sphi 0, %s143
      %s160 = sphi 0, %s144
      %s166 = sphi 0, %s168
      %s169 = sphi 0, %s166
      %s170 = sphi 0, %s169
      %s186 = sphi 0, %s170
      %s194 = sphi 0, %s196
      %s197 = sphi 0, %s194
      %s198 = sphi 0, %s197
      %s214 = sphi 0, %s198
    $region4: #{row_parallel_linear_with_lora.1} parent=1 // loop_header_branch
      %24 = sbr.rel (%p22) target = $region8
    $region5: #{row_parallel_linear_with_lora.1} parent=1 // loop_body
      %s26 = ssub.s32 %s21, 1
      %s27 = ssub.s32 %s21, 2
      %s37 = sadd.s32 1, %s30
      %p38 = scmp.ge.s32.totalorder %s37, 2
      %s39 = scalar_select %p38, 0, %s37
      %s40 = sadd.s32 1, %s29
      %s41 = scalar_select %p38, %s40, %s29
      %p42 = scmp.ge.s32.totalorder %s41, 1
      %s43 = scalar_select %p42, 0, %s41
      %s44 = sadd.s32 1, %s28
      %s45 = scalar_select %p42, %s44, %s28
      %p46 = scmp.ge.s32.totalorder %s45, 1
      %s47 = scalar_select %p46, 0, %s45
      %s48 = ssub.s32 %s28, %s47
      %s49 = ssub.s32 %s30, %s39
      %s50 = sor.u32 %s48, %s49
      %p51 = scmp.eq.s32.totalorder %s50, 0
      %s53 = sadd.s32 %s52, 1
      %s54 = scalar_select %p51, %s52, %s53
      %p57 = pneg %p51
      %p58 = scmp.eq.s32.totalorder %s21, 1
      %p59 = por %p57, %p58
      %p60 = scmp.ne.s32.totalorder %s52, %s55
      %p61 = scmp.eq.s32.totalorder %s21, 0
      %p62 = por %p60, %p61
      %p63 = scmp.ne.s32.totalorder %s52, %s55
      %p64 = scmp.eq.s32.totalorder %s26, 1
      %p65 = por %p63, %p64
      %p66 = scmp.ne.s32.totalorder %s55, %s56
      %p67 = scmp.eq.s32.totalorder %s26, 0
      %p68 = por %p66, %p67
      %p69 = scmp.ne.s32.totalorder %s55, %s56
      %p70 = scmp.eq.s32.totalorder %s27, 1
      %p71 = por %p69, %p70
      %p73 = scmp.ne.s32.totalorder %s56, %s72
      %p74 = scmp.eq.s32.totalorder %s27, 0
      %p75 = por %p73, %p74
      %s76 = ssub.s32 %s29, %s43
      %s77 = ssub.s32 %s30, %s39
      %s78 = sor.u32 %s76, %s77
      %p79 = scmp.eq.s32.totalorder %s78, 0
      %s81 = sadd.s32 %s80, 1
      %s82 = scalar_select %p79, %s80, %s81
      %p85 = pneg %p79
      %p86 = scmp.eq.s32.totalorder %s21, 1
      %p87 = por %p85, %p86
      %p88 = scmp.ne.s32.totalorder %s80, %s83
      %p89 = scmp.eq.s32.totalorder %s21, 0
      %p90 = por %p88, %p89
      %p91 = scmp.ne.s32.totalorder %s80, %s83
      %p92 = scmp.eq.s32.totalorder %s26, 1
      %p93 = por %p91, %p92
      %p94 = scmp.ne.s32.totalorder %s83, %s84
      %p95 = scmp.eq.s32.totalorder %s26, 0
      %p96 = por %p94, %p95
      %p97 = scmp.ne.s32.totalorder %s83, %s84
      %p98 = scmp.eq.s32.totalorder %s27, 1
      %p99 = por %p97, %p98
      %p101 = scmp.ne.s32.totalorder %s84, %s100
      %p102 = scmp.eq.s32.totalorder %s27, 0
      %p103 = por %p101, %p102
      %s104 = sld [smem:[#allocation5]]
      %s105 = sld [smem:[#allocation5]]
      %s106 = ssub.s32 %s104, %s105
      %s107 = ssub.s32 %s30, %s39
      %s108 = sor.u32 %s106, %s107
      %p109 = scmp.eq.s32.totalorder %s108, 0
      %s111 = sadd.s32 %s110, 1
      %s112 = scalar_select %p109, %s110, %s111
      %p115 = pneg %p109
      %p116 = scmp.eq.s32.totalorder %s21, 1
      %p117 = por %p115, %p116
      %p118 = scmp.ne.s32.totalorder %s110, %s113
      %p119 = scmp.eq.s32.totalorder %s21, 0
      %p120 = por %p118, %p119
      %p121 = scmp.ne.s32.totalorder %s110, %s113
      %p122 = scmp.eq.s32.totalorder %s26, 1
      %p123 = por %p121, %p122
      %p124 = scmp.ne.s32.totalorder %s113, %s114
      %p125 = scmp.eq.s32.totalorder %s26, 0
      %p126 = por %p124, %p125
      %p127 = scmp.ne.s32.totalorder %s113, %s114
      %p128 = scmp.eq.s32.totalorder %s27, 1
      %p129 = por %p127, %p128
      %p131 = scmp.ne.s32.totalorder %s114, %s130
      %p132 = scmp.eq.s32.totalorder %s27, 0
      %p133 = por %p131, %p132
      %s134 = sld [smem:[#allocation5]]
      %s135 = sld [smem:[#allocation5]]
      %s136 = ssub.s32 %s134, %s135
      %s137 = ssub.s32 %s29, %s43
      %s138 = sor.u32 %s136, %s137
      %p139 = scmp.eq.s32.totalorder %s138, 0
      %s141 = sadd.s32 %s140, 1
      %s142 = scalar_select %p139, %s140, %s141
      %p145 = pneg %p139
      %p146 = scmp.eq.s32.totalorder %s21, 1
      %p147 = por %p145, %p146
      %p148 = scmp.ne.s32.totalorder %s140, %s143
      %p149 = scmp.eq.s32.totalorder %s21, 0
      %p150 = por %p148, %p149
      %p151 = scmp.ne.s32.totalorder %s140, %s143
      %p152 = scmp.eq.s32.totalorder %s26, 1
      %p153 = por %p151, %p152
      %p154 = scmp.ne.s32.totalorder %s143, %s144
      %p155 = scmp.eq.s32.totalorder %s26, 0
      %p156 = por %p154, %p155
      %p157 = scmp.ne.s32.totalorder %s143, %s144
      %p158 = scmp.eq.s32.totalorder %s27, 1
      %p159 = por %p157, %p158
      %p161 = scmp.ne.s32.totalorder %s144, %s160
      %p162 = scmp.eq.s32.totalorder %s27, 0
      %p163 = por %p161, %p162
      %s164 = ssub.s32 %s29, %s43
      %p165 = scmp.eq.s32.totalorder %s164, 0
      %s167 = sadd.s32 %s166, 1
      %s168 = scalar_select %p165, %s166, %s167
      %p171 = pneg %p165
      %p172 = scmp.eq.s32.totalorder %s21, 1
      %p173 = por %p171, %p172
      %p174 = scmp.ne.s32.totalorder %s166, %s169
      %p175 = scmp.eq.s32.totalorder %s21, 0
      %p176 = por %p174, %p175
      %p177 = scmp.ne.s32.totalorder %s166, %s169
      %p178 = scmp.eq.s32.totalorder %s26, 1
      %p179 = por %p177, %p178
      %p180 = scmp.ne.s32.totalorder %s169, %s170
      %p181 = scmp.eq.s32.totalorder %s26, 0
      %p182 = por %p180, %p181
      %p183 = scmp.ne.s32.totalorder %s169, %s170
      %p184 = scmp.eq.s32.totalorder %s27, 1
      %p185 = por %p183, %p184
      %p187 = scmp.ne.s32.totalorder %s170, %s186
      %p188 = scmp.eq.s32.totalorder %s27, 0
      %p189 = por %p187, %p188
      %s190 = ssub.s32 %s28, %s47
      %s191 = ssub.s32 %s29, %s43
      %s192 = sor.u32 %s190, %s191
      %p193 = scmp.eq.s32.totalorder %s192, 0
      %s195 = sadd.s32 %s194, 1
      %s196 = scalar_select %p193, %s194, %s195
      %p199 = pneg %p193
      %p200 = scmp.eq.s32.totalorder %s21, 1
      %p201 = por %p199, %p200
      %p202 = scmp.ne.s32.totalorder %s194, %s197
      %p203 = scmp.eq.s32.totalorder %s21, 0
      %p204 = por %p202, %p203
      %p205 = scmp.ne.s32.totalorder %s194, %s197
      %p206 = scmp.eq.s32.totalorder %s26, 1
      %p207 = por %p205, %p206
      %p208 = scmp.ne.s32.totalorder %s197, %s198
      %p209 = scmp.eq.s32.totalorder %s26, 0
      %p210 = por %p208, %p209
      %p211 = scmp.ne.s32.totalorder %s197, %s198
      %p212 = scmp.eq.s32.totalorder %s27, 1
      %p213 = por %p211, %p212
      %p215 = scmp.ne.s32.totalorder %s198, %s214
      %p216 = scmp.eq.s32.totalorder %s27, 0
      %p217 = por %p215, %p216
      %p218 = scmp.le.s32.totalorder 1, %s21
      %p219 = scmp.lt.s32.totalorder %s21, 3
      %p220 = pnand %p218, %p219
      %p221 = pneg %p220
      // Predicated region
      $region9: #{row_parallel_linear_with_lora.1} parent=5 // pred_check
        _
      $region10: #{row_parallel_linear_with_lora.1} parent=5 // pred_check_branch
        %223 = sbr.rel (%p220) target = $region12
      $region11: #{row_parallel_linear_with_lora.1} parent=5 // pred_region
        %s224 = ssub.s32 %s21, 1
        // Predicated region
        $region13: #{row_parallel_linear_with_lora.1} parent=11 // pred_check
          %p225 = pneg %p156
        $region14: #{row_parallel_linear_with_lora.1} parent=11 // pred_check_branch
          %227 = sbr.rel (%p225) target = $region16
        $region15: #{row_parallel_linear_with_lora.1} parent=11 // pred_region
          %s228 = sld [smem:[#allocation5]]
          %s229 = smul.u32 2, %s32
          %231 = vsyncadd [#allocation13], 0
          %s232 = smul.addr %s228, 2
          %s233 = sadd.s32 %s229, %s232
          %s234 = smul.addr %s233, 8
          %s235 = scalar_lea.hbm %s4, %s234
          %s237 = sshll.u32 %s235, 4
          %s238 = int_to_ptr.hbm [resolvable:$true] %s237
          %s239 = sshll.u32 [#allocation12], 4
          %s240 = int_to_ptr.vmem [resolvable:$true] %s239
          %242 = dma.hbm_to_vmem [thread:$0]  %s238, 256, %s240, [#allocation13]
        $region16: #{row_parallel_linear_with_lora.1} parent=11 // pred_fallthru
          _
        // Predicated region
        $region17: #{row_parallel_linear_with_lora.1} parent=11 // pred_check
          %p243 = pneg %p182
        $region18: #{row_parallel_linear_with_lora.1} parent=11 // pred_check_branch
          %245 = sbr.rel (%p243) target = $region20
        $region19: #{row_parallel_linear_with_lora.1} parent=11 // pred_region
          %s246 = smul.u32 2, %s32
          %p247 = scmp.lt.s32.totalorder %s246, 1
          %s248 = scalar_select %p247, %s246, 1
          %s249 = scalar_lea.vmem %s5, %s248
          %s250 = smul.u32 2, %s32
        $region20: #{row_parallel_linear_with_lora.1} parent=11 // pred_fallthru
          _
      $region12: #{row_parallel_linear_with_lora.1} parent=5 // pred_fallthru
        _
      %p251 = scmp.lt.s32.totalorder %s21, 2
      // Predicated region
      $region21: #{row_parallel_linear_with_lora.1} parent=5 // pred_check
        %p252 = pneg %p251
      $region22: #{row_parallel_linear_with_lora.1} parent=5 // pred_check_branch
        %254 = sbr.rel (%p252) target = $region24
      $region23: #{row_parallel_linear_with_lora.1} parent=5 // pred_region
        // Predicated region
        $region25: #{row_parallel_linear_with_lora.1} parent=23 // pred_check
          %p255 = pneg %p62
        $region26: #{row_parallel_linear_with_lora.1} parent=23 // pred_check_branch
          %257 = sbr.rel (%p255) target = $region28
        $region27: #{row_parallel_linear_with_lora.1} parent=23 // pred_region
          %s258 = sand.u32 %s52, 1
          %s259 = scalar_lea.sflag [#allocation7], %s258
          %s260 = sand.u32 %s52, 1
          %s261 = smul.addr %s260, 16
          %s262 = scalar_lea.vmem [#allocation6], %s261
          %s263 = smul.u32 2, %s28
          %265 = vsyncadd %s259, 0
          %s266 = smul.addr %s263, 2
          %s267 = sadd.s32 %s30, %s266
          %s268 = smul.addr %s267, 8
          %s269 = scalar_lea.hbm %s1, %s268
          %s270 = sshll.u32 %s269, 4
          %s271 = int_to_ptr.hbm [resolvable:$true] %s270
          %s272 = sshll.u32 %s262, 4
          %s273 = int_to_ptr.vmem [resolvable:$true] %s272
          %278 = dma.hbm_to_vmem [thread:$0]  %s271, 256, %s273, %s259, 256, 128, 8
        $region28: #{row_parallel_linear_with_lora.1} parent=23 // pred_fallthru
          _
        // Predicated region
        $region29: #{row_parallel_linear_with_lora.1} parent=23 // pred_check
          %p279 = pneg %p90
        $region30: #{row_parallel_linear_with_lora.1} parent=23 // pred_check_branch
          %281 = sbr.rel (%p279) target = $region32
        $region31: #{row_parallel_linear_with_lora.1} parent=23 // pred_region
          %s282 = sand.u32 %s21, 1
          %s283 = scalar_lea.sflag [#allocation10], %s282
          %s284 = sand.u32 %s80, 1
          %s285 = smul.addr %s284, 256
          %s286 = scalar_lea.vmem [#allocation9], %s285
          %s287 = smul.u32 32, %s29
          %289 = vsyncadd %s283, 0
          %s290 = smul.addr %s287, 2
          %s291 = sadd.s32 %s30, %s290
          %s292 = smul.addr %s291, 8
          %s293 = scalar_lea.hbm %s2, %s292
          %s294 = sshll.u32 %s293, 4
          %s295 = int_to_ptr.hbm [resolvable:$true] %s294
          %s296 = sshll.u32 %s286, 4
          %s297 = int_to_ptr.vmem [resolvable:$true] %s296
          %302 = dma.hbm_to_vmem [thread:$0]  %s295, 4096, %s297, %s283, 256, 128, 8
        $region32: #{row_parallel_linear_with_lora.1} parent=23 // pred_fallthru
          _
        // Predicated region
        $region33: #{row_parallel_linear_with_lora.1} parent=23 // pred_check
          %p303 = pneg %p120
        $region34: #{row_parallel_linear_with_lora.1} parent=23 // pred_check_branch
          %305 = sbr.rel (%p303) target = $region36
        $region35: #{row_parallel_linear_with_lora.1} parent=23 // pred_region
          %s306 = sand.u32 %s21, 1
          %s307 = scalar_lea.sflag [#allocation10], %s306
          %s308 = sand.u32 %s110, 1
          %s309 = smul.addr %s308, 8
          %s310 = scalar_lea.vmem [#allocation11], %s309
          %s311 = sld [smem:[#allocation5]]
          %313 = vsyncadd %s307, 0
          %s314 = smul.addr %s311, 2
          %s315 = sadd.s32 %s30, %s314
          %s316 = smul.addr %s315, 8
          %s317 = scalar_lea.hbm %s3, %s316
          %s319 = sshll.u32 %s317, 4
          %s320 = int_to_ptr.hbm [resolvable:$true] %s319
          %s321 = sshll.u32 %s310, 4
          %s322 = int_to_ptr.vmem [resolvable:$true] %s321
          %324 = dma.hbm_to_vmem [thread:$0]  %s320, 128, %s322, %s307
        $region36: #{row_parallel_linear_with_lora.1} parent=23 // pred_fallthru
          _
      $region24: #{row_parallel_linear_with_lora.1} parent=5 // pred_fallthru
        _
      %p325 = scmp.le.s32.totalorder 1, %s21
      %p326 = scmp.lt.s32.totalorder %s21, 3
      %p327 = pnand %p325, %p326
      %p328 = pneg %p327
      // Predicated region
      $region37: #{row_parallel_linear_with_lora.1} parent=5 // pred_check
        _
      $region38: #{row_parallel_linear_with_lora.1} parent=5 // pred_check_branch
        %330 = sbr.rel (%p327) target = $region40
      $region39: #{row_parallel_linear_with_lora.1} parent=5 // pred_region
        %s331 = ssub.s32 %s21, 1
        %s332 = sand.u32 %s55, 1
        %s333 = scalar_lea.sflag [#allocation7], %s332
        %s334 = sand.u32 %s55, 1
        %s335 = smul.addr %s334, 16
        %s336 = scalar_lea.vmem [#allocation6], %s335
        // Predicated region
        $region41: #{row_parallel_linear_with_lora.1} parent=39 // pred_check
          %p337 = pneg %p68
        $region42: #{row_parallel_linear_with_lora.1} parent=39 // pred_check_branch
          %339 = sbr.rel (%p337) target = $region44
        $region43: #{row_parallel_linear_with_lora.1} parent=39 // pred_region
          %341 = dma.done %s333, 256
        $region44: #{row_parallel_linear_with_lora.1} parent=39 // pred_fallthru
          _
        %s342 = sand.u32 %s26, 1
        %s343 = scalar_lea.sflag [#allocation10], %s342
        %s344 = sand.u32 %s83, 1
        %s345 = smul.addr %s344, 256
        %s346 = scalar_lea.vmem [#allocation9], %s345
        // Predicated region
        $region45: #{row_parallel_linear_with_lora.1} parent=39 // pred_check
          %p347 = pneg %p96
        $region46: #{row_parallel_linear_with_lora.1} parent=39 // pred_check_branch
          %349 = sbr.rel (%p347) target = $region48
        $region47: #{row_parallel_linear_with_lora.1} parent=39 // pred_region
          %351 = dma.done %s343, 4096
        $region48: #{row_parallel_linear_with_lora.1} parent=39 // pred_fallthru
          _
        %s352 = sand.u32 %s26, 1
        %s353 = scalar_lea.sflag [#allocation10], %s352
        %s354 = sand.u32 %s113, 1
        %s355 = smul.addr %s354, 8
        %s356 = scalar_lea.vmem [#allocation11], %s355
        // Predicated region
        $region49: #{row_parallel_linear_with_lora.1} parent=39 // pred_check
          %p357 = pneg %p126
        $region50: #{row_parallel_linear_with_lora.1} parent=39 // pred_check_branch
          %359 = sbr.rel (%p357) target = $region52
        $region51: #{row_parallel_linear_with_lora.1} parent=39 // pred_region
          %361 = dma.done %s353, 128
        $region52: #{row_parallel_linear_with_lora.1} parent=39 // pred_fallthru
          _
        // Predicated region
        $region53: #{row_parallel_linear_with_lora.1} parent=39 // pred_check
          %p362 = pneg %p156
        $region54: #{row_parallel_linear_with_lora.1} parent=39 // pred_check_branch
          %364 = sbr.rel (%p362) target = $region56
        $region55: #{row_parallel_linear_with_lora.1} parent=39 // pred_region
          %366 = dma.done [#allocation13], 256
        $region56: #{row_parallel_linear_with_lora.1} parent=39 // pred_fallthru
          _
        %s367 = sand.u32 %s55, 1
        %s368 = scalar_lea.sflag [#allocation7], %s367
        %s369 = sand.u32 %s55, 1
        %s370 = smul.addr %s369, 16
        %s371 = scalar_lea.vmem [#allocation6], %s370
        %p372 = pneg %p68
        %p373 = pneg %p65
        %s374 = sand.u32 %s26, 1
        %s375 = scalar_lea.sflag [#allocation10], %s374
        %s376 = sand.u32 %s83, 1
        %s377 = smul.addr %s376, 256
        %s378 = scalar_lea.vmem [#allocation9], %s377
        %p379 = pneg %p96
        %p380 = pneg %p93
        %s381 = sand.u32 %s26, 1
        %s382 = scalar_lea.sflag [#allocation10], %s381
        %s383 = sand.u32 %s113, 1
        %s384 = smul.addr %s383, 8
        %s385 = scalar_lea.vmem [#allocation11], %s384
        %p386 = pneg %p126
        %p387 = pneg %p123
        %p388 = pneg %p156
        %p389 = pneg %p153
        %s390 = smul.u32 2, %s32
        %p391 = scmp.lt.s32.totalorder %s390, 1
        %s392 = scalar_select %p391, %s390, 1
        %s393 = scalar_lea.vmem %s5, %s392
        %p394 = pneg %p182
        %p395 = pneg %p179
        %p396 = pneg %p210
        %p397 = pneg %p207
        %s398 = smul.u32 2, %s31
        %s399 = smul.u32 32, %s32
        %s400 = sld [smem:[#allocation5]]
        %s401 = sld [smem:[#allocation5]]
        %s402 = smul.u32 2, %s32
        %s403 = smul.u32 2, %s32
        %p404 = scmp.lt.s32.totalorder %s403, 1
        %s405 = scalar_select %p404, %s403, 1
        %s406 = scalar_lea.vmem %s5, %s405
        %s407 = smul.u32 2, %s32
        %s408 = smul.u32 2, %s31
        %s409 = smul.u32 2, %s32
        %p410 = scmp.eq.s32.totalorder %s33, 0
        // Predicated region
        $region57: #{row_parallel_linear_with_lora.1} parent=39 // pred_check
          %p411 = pneg %p410
        $region58: #{row_parallel_linear_with_lora.1} parent=39 // pred_check_branch
          %413 = sbr.rel (%p411) target = $region60
        $region59: #{row_parallel_linear_with_lora.1} parent=39 // pred_region
          %414 = vst [vmem:[#allocation2] sm:$0xff] 0.0
          %415 = vst [vmem:[#allocation2 + $0x8] sm:$0xff] 0.0
          %416 = vst [vmem:[#allocation2 + $0x10] sm:$0xff] 0.0
          %417 = vst [vmem:[#allocation2 + $0x18] sm:$0xff] 0.0
          %vm418 = vcmask 64512
          %419 = vst.msk [vmem:[#allocation3] sm:$0xff] %vm418, 0.0
          %420 = vst.msk [vmem:[#allocation3 + $0x8] sm:$0xff] %vm418, 0.0
        $region60: #{row_parallel_linear_with_lora.1} parent=39 // pred_fallthru
          _
        %v421 = vld [vmem:[%s336] sm:$0xff]
        %v422 = vld [vmem:[%s336 + $0x8] sm:$0xff]
        %v423 = vld [vmem:[#allocation2] sm:$0xff]
        %v424 = vld [vmem:[#allocation2 + $0x8] sm:$0xff]
        %v425 = vld [vmem:[#allocation2 + $0x10] sm:$0xff]
        %v426 = vld [vmem:[#allocation2 + $0x18] sm:$0xff]
        %v427 = vld [vmem:[%s346] sm:$0xff]
        %v428 = vld [vmem:[%s346 + $0x8] sm:$0xff]
        %v429 = vld [vmem:[%s346 + $0x10] sm:$0xff]
        %v430 = vld [vmem:[%s346 + $0x18] sm:$0xff]
        %v431 = vld [vmem:[%s346 + $0x20] sm:$0xff]
        %v432 = vld [vmem:[%s346 + $0x28] sm:$0xff]
        %v433 = vld [vmem:[%s346 + $0x30] sm:$0xff]
        %v434 = vld [vmem:[%s346 + $0x38] sm:$0xff]
        %v435 = vld [vmem:[%s346 + $0x40] sm:$0xff]
        %v436 = vld [vmem:[%s346 + $0x48] sm:$0xff]
        %v437 = vld [vmem:[%s346 + $0x50] sm:$0xff]
        %v438 = vld [vmem:[%s346 + $0x58] sm:$0xff]
        %v439 = vld [vmem:[%s346 + $0x60] sm:$0xff]
        %v440 = vld [vmem:[%s346 + $0x68] sm:$0xff]
        %v441 = vld [vmem:[%s346 + $0x70] sm:$0xff]
        %v442 = vld [vmem:[%s346 + $0x78] sm:$0xff]
        %v443 = vld [vmem:[%s346 + $0x80] sm:$0xff]
        %v444 = vld [vmem:[%s346 + $0x88] sm:$0xff]
        %v445 = vld [vmem:[%s346 + $0x90] sm:$0xff]
        %v446 = vld [vmem:[%s346 + $0x98] sm:$0xff]
        %v447 = vld [vmem:[%s346 + $0xa0] sm:$0xff]
        %v448 = vld [vmem:[%s346 + $0xa8] sm:$0xff]
        %v449 = vld [vmem:[%s346 + $0xb0] sm:$0xff]
        %v450 = vld [vmem:[%s346 + $0xb8] sm:$0xff]
        %v451 = vld [vmem:[%s346 + $0xc0] sm:$0xff]
        %v452 = vld [vmem:[%s346 + $0xc8] sm:$0xff]
        %v453 = vld [vmem:[%s346 + $0xd0] sm:$0xff]
        %v454 = vld [vmem:[%s346 + $0xd8] sm:$0xff]
        %v455 = vld [vmem:[%s346 + $0xe0] sm:$0xff]
        %v456 = vld [vmem:[%s346 + $0xe8] sm:$0xff]
        %v457 = vld [vmem:[%s346 + $0xf0] sm:$0xff]
        %v458 = vld [vmem:[%s346 + $0xf8] sm:$0xff]
        %459 = vmatpush.xpose.msra.mxu0 %v442
        %460 = vmatpush.xpose.msra.mxu0 %v441
        %461 = vmatpush.xpose.msra.mxu0 %v440
        %462 = vmatpush.xpose.msra.mxu0 %v439
        %463 = vmatpush.xpose.msra.mxu0 %v438
        %464 = vmatpush.xpose.msra.mxu0 %v437
        %465 = vmatpush.xpose.msra.mxu0 %v436
        %466 = vmatpush.xpose.msra.mxu0 %v435
        %467 = vmatpush.xpose.msra.mxu0 %v434
        %468 = vmatpush.xpose.msra.mxu0 %v433
        %469 = vmatpush.xpose.msra.mxu0 %v432
        %470 = vmatpush.xpose.msra.mxu0 %v431
        %471 = vmatpush.xpose.msra.mxu0 %v430
        %472 = vmatpush.xpose.msra.mxu0 %v429
        %473 = vmatpush.xpose.msra.mxu0 %v428
        %474 = vmatpush.xpose.msra.mxu0 %v427
        %475 = vmatmul.f32.gmra.mxu0 %v421
        %v476 = vpop.f32.mrf.mxu0
        %v477 = vadd.f32 0.0, %v476
        %478 = vmatmul.f32.gmra.mxu0 %v422
        %v479 = vpop.f32.mrf.mxu0
        %v480 = vadd.f32 0.0, %v479
        %481 = vdwg.mxu0
        %482 = vmatpush.xpose.msra.mxu0 %v458
        %483 = vmatpush.xpose.msra.mxu0 %v457
        %484 = vmatpush.xpose.msra.mxu0 %v456
        %485 = vmatpush.xpose.msra.mxu0 %v455
        %486 = vmatpush.xpose.msra.mxu0 %v454
        %487 = vmatpush.xpose.msra.mxu0 %v453
        %488 = vmatpush.xpose.msra.mxu0 %v452
        %489 = vmatpush.xpose.msra.mxu0 %v451
        %490 = vmatpush.xpose.msra.mxu0 %v450
        %491 = vmatpush.xpose.msra.mxu0 %v449
        %492 = vmatpush.xpose.msra.mxu0 %v448
        %493 = vmatpush.xpose.msra.mxu0 %v447
        %494 = vmatpush.xpose.msra.mxu0 %v446
        %495 = vmatpush.xpose.msra.mxu0 %v445
        %496 = vmatpush.xpose.msra.mxu0 %v444
        %497 = vmatpush.xpose.msra.mxu0 %v443
        %498 = vmatmul.f32.gmra.mxu0 %v421
        %v499 = vpop.f32.mrf.mxu0
        %v500 = vadd.f32 0.0, %v499
        %501 = vmatmul.f32.gmra.mxu0 %v422
        %v502 = vpop.f32.mrf.mxu0
        %v503 = vadd.f32 0.0, %v502
        %504 = vdwg.mxu0
        %v505 = vadd.f32 %v423, %v477
        %v506 = vadd.f32 %v424, %v500
        %v507 = vadd.f32 %v425, %v480
        %v508 = vadd.f32 %v426, %v503
        %509 = vst [vmem:[#allocation2] sm:$0xff] %v505
        %510 = vst [vmem:[#allocation2 + $0x8] sm:$0xff] %v506
        %511 = vst [vmem:[#allocation2 + $0x10] sm:$0xff] %v507
        %512 = vst [vmem:[#allocation2 + $0x18] sm:$0xff] %v508
        %v513 = vld [vmem:[#allocation3] sm:$0xff]
        %v514 = vld [vmem:[#allocation3 + $0x8] sm:$0xff]
        %v515 = vld [vmem:[%s356] sm:$0xff]
        %516 = vmatpush.xpose.msra.mxu0 0.0
        %517 = vmatpush.xpose.msra.mxu0 0.0
        %518 = vmatpush.xpose.msra.mxu0 0.0
        %519 = vmatpush.xpose.msra.mxu0 0.0
        %520 = vmatpush.xpose.msra.mxu0 0.0
        %521 = vmatpush.xpose.msra.mxu0 0.0
        %522 = vmatpush.xpose.msra.mxu0 0.0
        %523 = vmatpush.xpose.msra.mxu0 0.0
        %524 = vmatpush.xpose.msra.mxu0 0.0
        %525 = vmatpush.xpose.msra.mxu0 0.0
        %526 = vmatpush.xpose.msra.mxu0 0.0
        %527 = vmatpush.xpose.msra.mxu0 0.0
        %528 = vmatpush.xpose.msra.mxu0 0.0
        %529 = vmatpush.xpose.msra.mxu0 0.0
        %530 = vmatpush.xpose.msra.mxu0 0.0
        %531 = vmatpush.xpose.msra.mxu0 %v515
        %532 = vmatmul.f32.gmra.mxu0 %v421
        %v533 = vpop.f32.mrf.mxu0
        %v534 = vadd.f32 0.0, %v533
        %535 = vmatmul.f32.gmra.mxu0 %v422
        %v536 = vpop.f32.mrf.mxu0
        %v537 = vadd.f32 0.0, %v536
        %538 = vdwg.mxu0
        %v539 = vadd.f32 %v513, %v534
        %v540 = vadd.f32 %v514, %v537
        %vm541 = vcmask 64512
        %542 = vst.msk [vmem:[#allocation3] sm:$0xff] %vm541, %v539
        %543 = vst.msk [vmem:[#allocation3 + $0x8] sm:$0xff] %vm541, %v540
        %p544 = scmp.eq.s32.totalorder %s33, 1
        // Predicated region
        $region61: #{row_parallel_linear_with_lora.1} parent=39 // pred_check
          %p545 = pneg %p544
        $region62: #{row_parallel_linear_with_lora.1} parent=39 // pred_check_branch
          %547 = sbr.rel (%p545) target = $region64
        $region63: #{row_parallel_linear_with_lora.1} parent=39 // pred_region
          %v548 = vld [vmem:[#allocation3] sm:$0xff]
          %v549 = vld [vmem:[#allocation3 + $0x8] sm:$0xff]
          %v550 = vld [vmem:[#allocation12] sm:$0xff]
          %v551 = vld [vmem:[#allocation12 + $0x8] sm:$0xff]
          %v553 = vsel %vm541, %v548, 0
          %v556 = vsel %vm541, %v549, 0
          %558 = vmatpush.msra.mxu0 0.0
          %559 = vmatpush.msra.mxu0 0.0
          %560 = vmatpush.msra.mxu0 0.0
          %561 = vmatpush.msra.mxu0 0.0
          %562 = vmatpush.msra.mxu0 0.0
          %563 = vmatpush.msra.mxu0 0.0
          %564 = vmatpush.msra.mxu0 0.0
          %565 = vmatpush.msra.mxu0 0.0
          %566 = vmatpush.msra.mxu0 0.0
          %567 = vmatpush.msra.mxu0 0.0
          %568 = vmatpush.msra.mxu0 0.0
          %569 = vmatpush.msra.mxu0 0.0
          %570 = vmatpush.msra.mxu0 0.0
          %571 = vmatpush.msra.mxu0 0.0
          %572 = vmatpush.msra.mxu0 0.0
          %573 = vmatpush.msra.mxu0 %v550
          %574 = vmatmul.f32.gmra.mxu0 %v553
          %v575 = vpop.f32.mrf.mxu0
          %v576 = vadd.f32 0.0, %v575
          %577 = vmatmul.f32.gmra.mxu0 %v556
          %v578 = vpop.f32.mrf.mxu0
          %v579 = vadd.f32 0.0, %v578
          %580 = vdwg.mxu0
          %581 = vmatpush.msra.mxu0 0.0
          %582 = vmatpush.msra.mxu0 0.0
          %583 = vmatpush.msra.mxu0 0.0
          %584 = vmatpush.msra.mxu0 0.0
          %585 = vmatpush.msra.mxu0 0.0
          %586 = vmatpush.msra.mxu0 0.0
          %587 = vmatpush.msra.mxu0 0.0
          %588 = vmatpush.msra.mxu0 0.0
          %589 = vmatpush.msra.mxu0 0.0
          %590 = vmatpush.msra.mxu0 0.0
          %591 = vmatpush.msra.mxu0 0.0
          %592 = vmatpush.msra.mxu0 0.0
          %593 = vmatpush.msra.mxu0 0.0
          %594 = vmatpush.msra.mxu0 0.0
          %595 = vmatpush.msra.mxu0 0.0
          %596 = vmatpush.msra.mxu0 %v551
          %597 = vmatmul.f32.gmra.mxu0 %v553
          %v598 = vpop.f32.mrf.mxu0
          %v599 = vadd.f32 0.0, %v598
          %600 = vmatmul.f32.gmra.mxu0 %v556
          %v601 = vpop.f32.mrf.mxu0
          %v602 = vadd.f32 0.0, %v601
          %603 = vdwg.mxu0
          %v604 = vld [vmem:[#allocation2] sm:$0xff]
          %v605 = vld [vmem:[#allocation2 + $0x8] sm:$0xff]
          %v606 = vld [vmem:[#allocation2 + $0x10] sm:$0xff]
          %v607 = vld [vmem:[#allocation2 + $0x18] sm:$0xff]
          %v608 = vadd.f32 %v604, %v576
          %v609 = vadd.f32 %v605, %v599
          %v610 = vadd.f32 %v606, %v579
          %v611 = vadd.f32 %v607, %v602
          %v612 = vld [vmem:[%s406] sm:$0x3]
          %v614 = vperm.slane %v612, 0
          %v615 = vperm.slane %v612, 1
          %v618 = vadd.f32 %v608, %v614
          %v619 = vadd.f32 %v609, %v615
          %v620 = vadd.f32 %v610, %v614
          %v621 = vadd.f32 %v611, %v615
          %622 = vst [vmem:[#allocation14] sm:$0xff] %v618
          %623 = vst [vmem:[#allocation14 + $0x8] sm:$0xff] %v619
          %624 = vst [vmem:[#allocation14 + $0x10] sm:$0xff] %v620
          %625 = vst [vmem:[#allocation14 + $0x18] sm:$0xff] %v621
        $region64: #{row_parallel_linear_with_lora.1} parent=39 // pred_fallthru
          _
        // Predicated region
        $region65: #{row_parallel_linear_with_lora.1} parent=39 // pred_check
          %p626 = pneg %p207
        $region66: #{row_parallel_linear_with_lora.1} parent=39 // pred_check_branch
          %628 = sbr.rel (%p626) target = $region68
        $region67: #{row_parallel_linear_with_lora.1} parent=39 // pred_region
          %s629 = smul.u32 2, %s31
          %s630 = smul.u32 2, %s32
          %632 = vsyncadd [#allocation8], 0
          %s633 = smul.addr %s629, 2
          %s634 = sadd.s32 %s630, %s633
          %s635 = smul.addr %s634, 8
          %s636 = scalar_lea.hbm %s6, %s635
          %s637 = sshll.u32 [#allocation14], 4
          %s638 = int_to_ptr.vmem [resolvable:$true] %s637
          %s639 = sshll.u32 %s636, 4
          %s640 = int_to_ptr.hbm [resolvable:$true] %s639
          %645 = dma.vmem_to_hbm [thread:$0]  %s638, 512, %s640, [#allocation8], 256, 256, 16
        $region68: #{row_parallel_linear_with_lora.1} parent=39 // pred_fallthru
          _
        // Predicated region
        $region69: #{row_parallel_linear_with_lora.1} parent=39 // pred_check
          %p646 = pneg %p207
        $region70: #{row_parallel_linear_with_lora.1} parent=39 // pred_check_branch
          %648 = sbr.rel (%p646) target = $region72
        $region71: #{row_parallel_linear_with_lora.1} parent=39 // pred_region
          %650 = dma.done [#allocation8], 512
        $region72: #{row_parallel_linear_with_lora.1} parent=39 // pred_fallthru
          _
      $region40: #{row_parallel_linear_with_lora.1} parent=5 // pred_fallthru
        _
      %p651 = scmp.le.s32.totalorder 2, %s21
      // Predicated region
      $region73: #{row_parallel_linear_with_lora.1} parent=5 // pred_check
        %p652 = pneg %p651
      $region74: #{row_parallel_linear_with_lora.1} parent=5 // pred_check_branch
        %654 = sbr.rel (%p652) target = $region76
      $region75: #{row_parallel_linear_with_lora.1} parent=5 // pred_region
        %s655 = ssub.s32 %s21, 2
      $region76: #{row_parallel_linear_with_lora.1} parent=5 // pred_fallthru
        _
    $region6: #{row_parallel_linear_with_lora.1} parent=1 // loop_footer
      %s25 = sadd.s32 1, %s21
    $region7: #{row_parallel_linear_with_lora.1} parent=1 // loop_footer_branch
      %20 = sbr.rel target = $region3
    $region8: #{row_parallel_linear_with_lora.1} parent=1 // loop_exit
      _
    %656 = vsyncpa [#allocation7], 1
    %s657 = scalar_lea.sflag [#allocation7], 1
    %658 = vsyncpa %s657, 1
    %659 = vsyncpa [#allocation10], 1
    %s660 = scalar_lea.sflag [#allocation10], 1
    %661 = vsyncpa %s660, 1
    %662 = vsyncpa [#allocation13], 1
    %663 = vsyncpa [#allocation8], 1
    %s664 = scalar_lea.sflag [#allocation8], 1
    %665 = vsyncpa %s664, 1

</llo_original>
